<compile_context>
chip_gen: v7x
topology: tpu7x:2x2x1
jax: 0.10.0
libtpu: 0.0.40
codegen_flags: <defaults>
</compile_context>

<pallas_src>
import functools

import jax
import jax.numpy as jnp
from jax.experimental import pallas as pl
from jax.experimental.pallas import tpu as pltpu

LANE = 128                           # lane-dense padded width of the class axis
_VMEM_LIMIT_BYTES = 48 * 1024 * 1024  # explicit scoped-VMEM limit (fits v7x 64MiB)
_VMEM_X_BUDGET_BYTES = 32 * 1024 * 1024  # budget for the double-buffered x tile


def _round_up(x, m):
    return ((x + m - 1) // m) * m


# ------------------------------ fused kernel -------------------------------

def fused_forward_kernel(x_ref, wc_ref, bc_ref, w1_ref, b1_ref, w2_ref, o_ref,
                         *, npad):
    # 1) GAP + both (backbone-proj @ replaced-head) branches in ONE MXU push:
    #    GAP (1/HW) is folded into wc, whose rows are expanded over C*HW, so
    #    (tb, K) @ (K, 2*npad) + bias gives both branch logits concatenated
    #    on the lane axis.
    logits = (jnp.dot(x_ref[...], wc_ref[...],
                      preferred_element_type=jnp.float32) + bc_ref[...])

    # 2) AttentionModule hidden layer for BOTH branches as one block-diagonal
    #    (2L x 2L) matmul: exactly fills the 256x256 MXU on v6e/v7x.
    h = jnp.tanh(jnp.dot(logits, w1_ref[...],
                         preferred_element_type=jnp.float32) + b1_ref[...])

    # 3) second attention linear (out_features=1): VPU multiply + lane reduce.
    s = h * w2_ref[...]
    s_r = jnp.sum(s[:, :npad], axis=-1, keepdims=True)               # (tb, 1)
    s_s = jnp.sum(s[:, npad:], axis=-1, keepdims=True)               # (tb, 1)

    # 4) 2-way softmax == sigmoid of the score difference (the scalar bias of
    #    the second attention linear cancels); sigmoid via one EUP tanh.
    w_r = 0.5 * (jnp.tanh(0.5 * (s_r - s_s)) + 1.0)
    w_s = 1.0 - w_r

    xr = logits[:, :npad]                                            # resnet
    xs = logits[:, npad:]                                            # swin
    o_ref[...] = (xr * w_r + xs * w_s).astype(o_ref.dtype)


# --------------------------- operand preparation ---------------------------

def prepare_fused_operands(p, hw, num_classes, k_pad, lane=LANE):
    """Collapse chained linears, fold 1/HW, expand GAP rows, pad to lanes."""
    inv_hw = 1.0 / float(hw)
    # resnet branch: pooled @ w_rproj @ w_fc + (b_rproj @ w_fc + b_fc)
    w_r = (p["w_rproj"] @ p["w_fc"]) * inv_hw                        # (C, nc)
    b_r = p["b_rproj"] @ p["w_fc"] + p["b_fc"]                       # (nc,)
    # swin branch: pooled @ w_sproj @ w_head + (b_sproj @ w_head + b_head)
    w_s = (p["w_sproj"] @ p["w_head"]) * inv_hw
    b_s = p["b_sproj"] @ p["w_head"] + p["b_head"]

    pad_n = lane - num_classes
    pad_cols = lambda a: jnp.pad(a, ((0, 0), (0, pad_n)))

    wc_c = jnp.concatenate([pad_cols(w_r), pad_cols(w_s)], axis=-1)  # (C, 2L)
    # expand GAP: row c*hw + s of the kernel weight equals wc_c[c, :]
    wc = jnp.repeat(wc_c, hw, axis=0)                                # (C*hw, 2L)
    wc = jnp.pad(wc, ((0, k_pad - wc.shape[0]), (0, 0)))             # (Kp, 2L)
    # TODO(synk): for backbone-scale C*hw the expanded wc exceeds VMEM; add an
    # "arbitrary" grid axis over hw with an f32 accumulator in that regime.

    bc = jnp.concatenate([jnp.pad(b_r, (0, pad_n)),
                          jnp.pad(b_s, (0, pad_n))])[None, :]        # (1, 2L)

    w1p = jnp.pad(p["w_att1"], ((0, pad_n), (0, pad_n)))             # (L, L)
    z = jnp.zeros_like(w1p)
    w1 = jnp.block([[w1p, z], [z, w1p]])                             # (2L, 2L)
    b1p = jnp.pad(p["b_att1"], (0, pad_n))
    b1 = jnp.concatenate([b1p, b1p])[None, :]                        # (1, 2L)
    w2p = jnp.pad(p["w_att2"][:, 0], (0, pad_n))
    w2 = jnp.concatenate([w2p, w2p])[None, :]                        # (1, 2L)
    # b_att2 cancels in the 2-way softmax -> not needed in the kernel.
    return wc, bc, w1, b1, w2


def _choose_batch_tile(B, k_pad, x_itemsize):
    """Batch tile: multiple of 8 sublanes, fits VMEM budget, >=2 grid steps."""
    per_row = 2 * k_pad * x_itemsize + 2 * 2 * LANE * 4   # dbl-buffered x + out
    max_rows = max(8, (_VMEM_X_BUDGET_BYTES // per_row) // 8 * 8)
    tb = min(max_rows, 512)
    if B >= 16:
        # at least 2 grid steps so both v7x TensorCores get work
        tb = min(tb, _round_up((B + 1) // 2, 8))
    else:
        tb = min(tb, _round_up(max(B, 1), 8))
    return max(tb, 8)


# ------------------------------ model wrapper ------------------------------

def init_params(key, c_in=3, f_resnet=128, f_swin=64, num_classes=6):
    ks = jax.random.split(key, 10)
    s = 0.1
    return {
        # synthetic backbone feature projections (stubs for resnet50 / swin)
        "w_rproj": s * jax.random.normal(ks[0], (c_in, f_resnet), jnp.float32),
        "b_rproj": s * jax.random.normal(ks[1], (f_resnet,), jnp.float32),
        "w_sproj": s * jax.random.normal(ks[2], (c_in, f_swin), jnp.float32),
        "b_sproj": s * jax.random.normal(ks[3], (f_swin,), jnp.float32),
        # the module's own replaced heads: resnet.fc / swin_transformer.head
        "w_fc": s * jax.random.normal(ks[4], (f_resnet, num_classes), jnp.float32),
        "b_fc": s * jax.random.normal(ks[5], (num_classes,), jnp.float32),
        "w_head": s * jax.random.normal(ks[6], (f_swin, num_classes), jnp.float32),
        "b_head": s * jax.random.normal(ks[7], (num_classes,), jnp.float32),
        # AttentionModule parameters
        "w_att1": s * jax.random.normal(ks[8], (num_classes, num_classes), jnp.float32),
        "b_att1": jnp.zeros((num_classes,), jnp.float32),
        "w_att2": s * jax.random.normal(ks[9], (num_classes, 1), jnp.float32),
        "b_att2": jnp.zeros((1,), jnp.float32),
    }


def awesome_model3_forward(x_nchw, p, num_classes=6, lane=LANE):
    B, C, H, W = x_nchw.shape
    hw = H * W
    K = C * hw
    k_pad = _round_up(K, lane)                 # lane-dense, unmasked loads

    # 2-D lane-dense input in its NATIVE dtype (bf16 halves DMA bytes);
    # zero-pad the K axis (padded wc rows are zero, so no contribution).
    x2 = jnp.pad(x_nchw.reshape(B, K), ((0, 0), (0, k_pad - K)))

    wc, bc, w1, b1, w2 = prepare_fused_operands(p, hw, num_classes, k_pad, lane)
    if x2.dtype == jnp.bfloat16:
        wc = wc.astype(jnp.bfloat16)           # matched bf16 MXU, f32 accum

    tb = _choose_batch_tile(B, k_pad, x2.dtype.itemsize)
    b_pad = _round_up(B, tb)                   # ragged batch: pad, slice later
    if b_pad != B:
        x2 = jnp.pad(x2, ((0, b_pad - B), (0, 0)))
    grid = (b_pad // tb,)
    full2d = lambda i: (0, 0)

    out_pad = pl.pallas_call(
        functools.partial(fused_forward_kernel, npad=lane),
        out_shape=jax.ShapeDtypeStruct((b_pad, lane), jnp.float32),
        grid=grid,
        in_specs=[
            pl.BlockSpec((tb, k_pad), lambda i: (i, 0)),
            pl.BlockSpec(wc.shape, full2d),
            pl.BlockSpec(bc.shape, full2d),
            pl.BlockSpec(w1.shape, full2d),
            pl.BlockSpec(b1.shape, full2d),
            pl.BlockSpec(w2.shape, full2d),
        ],
        out_specs=pl.BlockSpec((tb, lane), lambda i: (i, 0)),
        compiler_params=pltpu.CompilerParams(
            dimension_semantics=("parallel",),
            vmem_limit_bytes=_VMEM_LIMIT_BYTES),
    )(x2, wc, bc, w1, b1, w2)

    # slice away the batch padding and the lane-padded class axis
    return out_pad[:B, :num_classes]


def reference_forward(x_nchw, p):
    """Pure-jnp reference with the original (un-collapsed) parameters."""
    B, C, H, W = x_nchw.shape
    pooled = jnp.mean(x_nchw.reshape(B, C, H * W).astype(jnp.float32), axis=-1)
    feat_r = pooled @ p["w_rproj"] + p["b_rproj"]
    x_resnet = feat_r @ p["w_fc"] + p["b_fc"]
    feat_s = pooled @ p["w_sproj"] + p["b_sproj"]
    x_swin = feat_s @ p["w_head"] + p["b_head"]
    x_stacked = jnp.stack([x_resnet, x_swin], axis=1)                # (B, 2, 6)
    h = jnp.tanh(x_stacked @ p["w_att1"] + p["b_att1"])
    s = h @ p["w_att2"] + p["b_att2"]                                # (B, 2, 1)
    w = jax.nn.softmax(s, axis=1)
    return (x_stacked * w).sum(axis=1)


# --------------------------------- main -------------------------------------

if __name__ == "__main__":
    key = jax.random.PRNGKey(0)
    k_x, k_p = jax.random.split(key)

    B, C, H, W = 2, 3, 16, 16
    num_classes = 6
    x = jax.random.normal(k_x, (B, C, H, W), jnp.float32)            # NCHW input
    params = init_params(k_p, c_in=C, num_classes=num_classes)

    out = awesome_model3_forward(x, params, num_classes=num_classes)
    out = jax.block_until_ready(out)
    assert out.shape == (B, num_classes)

    ref = reference_forward(x, params)
    # exact 2-way softmax (sigmoid form, no approx reciprocal); remaining
    # drift is float-rounding-level from the algebraic linear collapse
    assert jnp.allclose(out, ref, atol=1e-3, rtol=1e-3), (out, ref)

    print("KERNEL_OK")
</pallas_src>

<mosaic_0001>
module attributes {stable_mosaic.version = 11 : i64} {
  func.func @fused_forward_kernel(%arg0: i32, %arg1: memref<8x768xf32, #tpu.memory_space<vmem>>, %arg2: memref<768x256xf32, #tpu.memory_space<vmem>>, %arg3: memref<1x256xf32, #tpu.memory_space<vmem>>, %arg4: memref<256x256xf32, #tpu.memory_space<vmem>>, %arg5: memref<1x256xf32, #tpu.memory_space<vmem>>, %arg6: memref<1x256xf32, #tpu.memory_space<vmem>>, %arg7: memref<8x128xf32, #tpu.memory_space<vmem>>) attributes {dimension_semantics = [#tpu.dimension_semantics<parallel>], iteration_bounds = array<i64: 1>, scalar_prefetch = 0 : i64, scratch_operands = 0 : i64, tpu.core_type = #tpu.core_type<tc>, window_params = [{transform_indices = @transform_0, window_bounds = array<i64: 8, 768>}, {pipeline_mode = #tpu.pipeline_mode<synchronous>, transform_indices = @transform_1, window_bounds = array<i64: 768, 256>}, {pipeline_mode = #tpu.pipeline_mode<synchronous>, transform_indices = @transform_2, window_bounds = array<i64: 1, 256>}, {pipeline_mode = #tpu.pipeline_mode<synchronous>, transform_indices = @transform_3, window_bounds = array<i64: 256, 256>}, {pipeline_mode = #tpu.pipeline_mode<synchronous>, transform_indices = @transform_4, window_bounds = array<i64: 1, 256>}, {pipeline_mode = #tpu.pipeline_mode<synchronous>, transform_indices = @transform_5, window_bounds = array<i64: 1, 256>}, {transform_indices = @transform_6, window_bounds = array<i64: 8, 128>}]} {
    %c0 = arith.constant 0 : index
    %c0_0 = arith.constant 0 : index
    %0 = vector.load %arg1[%c0, %c0_0] : memref<8x768xf32, #tpu.memory_space<vmem>>, vector<8x768xf32>
    %c0_1 = arith.constant 0 : index
    %c0_2 = arith.constant 0 : index
    %1 = vector.load %arg2[%c0_1, %c0_2] : memref<768x256xf32, #tpu.memory_space<vmem>>, vector<768x256xf32>
    %cst = arith.constant dense<0.000000e+00> : vector<8x256xf32>
    %2 = tpu.matmul %0, %1, %cst {dimension_numbers = #tpu.dot_dimension_numbers<[1], [0], [0], [1], [0, 0, 1, 1], [], []>} : vector<8x768xf32>, vector<768x256xf32>, vector<8x256xf32> -> vector<8x256xf32>
    %c0_3 = arith.constant 0 : index
    %c0_4 = arith.constant 0 : index
    %3 = vector.load %arg3[%c0_3, %c0_4] : memref<1x256xf32, #tpu.memory_space<vmem>>, vector<1x256xf32>
    %4 = vector.broadcast %3 : vector<1x256xf32> to vector<8x256xf32>
    %5 = arith.addf %2, %4 : vector<8x256xf32>
    %c0_5 = arith.constant 0 : index
    %c0_6 = arith.constant 0 : index
    %6 = vector.load %arg4[%c0_5, %c0_6] : memref<256x256xf32, #tpu.memory_space<vmem>>, vector<256x256xf32>
    %cst_7 = arith.constant dense<0.000000e+00> : vector<8x256xf32>
    %7 = tpu.matmul %5, %6, %cst_7 {dimension_numbers = #tpu.dot_dimension_numbers<[1], [0], [0], [1], [0, 0, 1, 1], [], []>} : vector<8x256xf32>, vector<256x256xf32>, vector<8x256xf32> -> vector<8x256xf32>
    %c0_8 = arith.constant 0 : index
    %c0_9 = arith.constant 0 : index
    %8 = vector.load %arg5[%c0_8, %c0_9] : memref<1x256xf32, #tpu.memory_space<vmem>>, vector<1x256xf32>
    %9 = vector.broadcast %8 : vector<1x256xf32> to vector<8x256xf32>
    %10 = arith.addf %7, %9 : vector<8x256xf32>
    %11 = math.tanh %10 : vector<8x256xf32>
    %c0_10 = arith.constant 0 : index
    %c0_11 = arith.constant 0 : index
    %12 = vector.load %arg6[%c0_10, %c0_11] : memref<1x256xf32, #tpu.memory_space<vmem>>, vector<1x256xf32>
    %13 = vector.broadcast %12 : vector<1x256xf32> to vector<8x256xf32>
    %14 = arith.mulf %11, %13 : vector<8x256xf32>
    %15 = vector.extract_strided_slice %14 {offsets = [0, 0], sizes = [8, 128], strides = [1, 1]} : vector<8x256xf32> to vector<8x128xf32>
    %cst_12 = arith.constant dense<0.000000e+00> : vector<8xf32>
    %16 = vector.multi_reduction <add>, %15, %cst_12 [1] : vector<8x128xf32> to vector<8xf32>
    %17 = vector.shape_cast %16 : vector<8xf32> to vector<8x1xf32>
    %18 = vector.extract_strided_slice %14 {offsets = [0, 128], sizes = [8, 128], strides = [1, 1]} : vector<8x256xf32> to vector<8x128xf32>
    %cst_13 = arith.constant dense<0.000000e+00> : vector<8xf32>
    %19 = vector.multi_reduction <add>, %18, %cst_13 [1] : vector<8x128xf32> to vector<8xf32>
    %20 = vector.shape_cast %19 : vector<8xf32> to vector<8x1xf32>
    %21 = arith.subf %17, %20 : vector<8x1xf32>
    %cst_14 = arith.constant 5.000000e-01 : f32
    %22 = vector.broadcast %cst_14 : f32 to vector<8x1xf32>
    %23 = arith.mulf %22, %21 : vector<8x1xf32>
    %24 = math.tanh %23 : vector<8x1xf32>
    %cst_15 = arith.constant 1.000000e+00 : f32
    %25 = vector.broadcast %cst_15 : f32 to vector<8x1xf32>
    %26 = arith.addf %24, %25 : vector<8x1xf32>
    %cst_16 = arith.constant 5.000000e-01 : f32
    %27 = vector.broadcast %cst_16 : f32 to vector<8x1xf32>
    %28 = arith.mulf %27, %26 : vector<8x1xf32>
    %cst_17 = arith.constant 1.000000e+00 : f32
    %29 = vector.broadcast %cst_17 : f32 to vector<8x1xf32>
    %30 = arith.subf %29, %28 : vector<8x1xf32>
    %31 = vector.extract_strided_slice %5 {offsets = [0, 0], sizes = [8, 128], strides = [1, 1]} : vector<8x256xf32> to vector<8x128xf32>
    %32 = vector.extract_strided_slice %5 {offsets = [0, 128], sizes = [8, 128], strides = [1, 1]} : vector<8x256xf32> to vector<8x128xf32>
    %33 = vector.broadcast %28 : vector<8x1xf32> to vector<8x128xf32>
    %34 = arith.mulf %31, %33 : vector<8x128xf32>
    %35 = vector.broadcast %30 : vector<8x1xf32> to vector<8x128xf32>
    %36 = arith.mulf %32, %35 : vector<8x128xf32>
    %37 = arith.addf %34, %36 : vector<8x128xf32>
    %c0_18 = arith.constant 0 : index
    %c0_19 = arith.constant 0 : index
    %38 = vector.load %arg7[%c0_18, %c0_19] : memref<8x128xf32, #tpu.memory_space<vmem>>, vector<8x128xf32>
    tpu.vector_store %arg7[%c0_18, %c0_19], %37 {strides = array<i32>} : memref<8x128xf32, #tpu.memory_space<vmem>>, vector<8x128xf32>,
    return
  }
  func.func @transform_0(%arg0: i32) -> (i32, i32) {
    %c0_i32 = arith.constant 0 : i32
    %c0_i32_0 = arith.constant 0 : i32
    return %arg0, %c0_i32 : i32, i32
  }
  func.func @transform_1(%arg0: i32) -> (i32, i32) {
    %c0_i32 = arith.constant 0 : i32
    %c0_i32_0 = arith.constant 0 : i32
    %c0_i32_1 = arith.constant 0 : i32
    return %c0_i32, %c0_i32_0 : i32, i32
  }
  func.func @transform_2(%arg0: i32) -> (i32, i32) {
    %c0_i32 = arith.constant 0 : i32
    %c0_i32_0 = arith.constant 0 : i32
    %c0_i32_1 = arith.constant 0 : i32
    return %c0_i32, %c0_i32_0 : i32, i32
  }
  func.func @transform_3(%arg0: i32) -> (i32, i32) {
    %c0_i32 = arith.constant 0 : i32
    %c0_i32_0 = arith.constant 0 : i32
    %c0_i32_1 = arith.constant 0 : i32
    return %c0_i32, %c0_i32_0 : i32, i32
  }
  func.func @transform_4(%arg0: i32) -> (i32, i32) {
    %c0_i32 = arith.constant 0 : i32
    %c0_i32_0 = arith.constant 0 : i32
    %c0_i32_1 = arith.constant 0 : i32
    return %c0_i32, %c0_i32_0 : i32, i32
  }
  func.func @transform_5(%arg0: i32) -> (i32, i32) {
    %c0_i32 = arith.constant 0 : i32
    %c0_i32_0 = arith.constant 0 : i32
    %c0_i32_1 = arith.constant 0 : i32
    return %c0_i32, %c0_i32_0 : i32, i32
  }
  func.func @transform_6(%arg0: i32) -> (i32, i32) {
    %c0_i32 = arith.constant 0 : i32
    %c0_i32_0 = arith.constant 0 : i32
    return %arg0, %c0_i32 : i32, i32
  }
}

</mosaic_0001>

<llo_original>
// kernel: tpu_custom_call.1
$region0: #{tpu_custom_call.1}
  #allocation0 [shape = 'u32[]', space=smem, size = 0x4, offset = 0x4, fixed_abs, tag = 'smem constant byte address 0x4 - core index']
  #allocation1 [shape = 'u32[144,128]{1,0:T(1,128)}', space=vmem, size = 0x12000, scoped, tag = 'internal scratch']
  %s0 = inlined_call_operand.hbm [shape: f32[8,768], index: 0, kind: input, shape index: {}]
  %s1 = inlined_call_operand.hbm [shape: f32[768,256], index: 1, kind: input, shape index: {}]
  %s2 = inlined_call_operand.vmem [shape: f32[1,256], index: 2, kind: input, shape index: {}]
  %s3 = inlined_call_operand.hbm [shape: f32[256,256], index: 3, kind: input, shape index: {}]
  %s4 = inlined_call_operand.vmem [shape: f32[1,256], index: 4, kind: input, shape index: {}]
  %s5 = inlined_call_operand.vmem [shape: f32[1,256], index: 5, kind: input, shape index: {}]
  %s6 = inlined_call_operand.hbm [shape: f32[8,128], index: 6, kind: output, shape index: {}]
  %s7 = sld [smem:[#allocation0]]
  $region46: #{tpu_custom_call.1} parent=0
    _
  %s9 = ssub.s32 1, %s7
  %s10 = scalar_select 0, %s9, %s7
  $region1: #{tpu_custom_call.1} parent=0
    #allocation2 [shape = 'u8[24576]{0}', space=vmem, size = 0x6000, scoped, tag = 'input window, operand 0, single buffered']
    #allocation3 [shape = 's32[1]{0}', space=sflag, size = 0x4, scoped, tag = 'scoped memory for tpu_custom_call.1']
    #allocation4 [shape = 's32[1]{0}', space=sflag, size = 0x4, scoped, tag = 'scoped memory for tpu_custom_call.1']
    #allocation5 [shape = 'u8[786432]{0}', space=vmem, size = 0xc0000, scoped, tag = 'input window, operand 1, single buffered']
    #allocation6 [shape = 's32[1]{0}', space=sflag, size = 0x4, scoped, tag = 'scoped memory for tpu_custom_call.1']
    #allocation7 [shape = 'u8[262144]{0}', space=vmem, size = 0x40000, scoped, tag = 'input window, operand 3, single buffered']
    #allocation8 [shape = 'u8[4096]{0}', space=vmem, size = 0x1000, scoped, tag = 'output window, operand 0, single buffered']
    %11 = vsyncpa [#allocation3], 0
    %12 = vsyncpa [#allocation6], 0
    %13 = vsyncpa [#allocation4], 0
    // Predicated region
    $region2: #{tpu_custom_call.1} parent=1 // pred_check
      _
    $region3: #{tpu_custom_call.1} parent=1 // pred_check_branch
      %15 = sbr.rel (0) target = $region5
    $region4: #{tpu_custom_call.1} parent=1 // pred_region
      %s17 = ssub.s32 768, 768
      %18 = vsyncadd [#allocation3], %s17
      %s20 = sshll.u32 [#allocation2], 4
      %s21 = int_to_ptr.vmem [resolvable:$true] %s20
      %23 = dma.hbm_to_vmem [thread:$0]  %s0, 768, %s21, [#allocation3]
    $region5: #{tpu_custom_call.1} parent=1 // pred_fallthru
      _
    // Predicated region
    $region6: #{tpu_custom_call.1} parent=1 // pred_check
      _
    $region7: #{tpu_custom_call.1} parent=1 // pred_check_branch
      %25 = sbr.rel (0) target = $region9
    $region8: #{tpu_custom_call.1} parent=1 // pred_region
      %s27 = ssub.s32 24576, 24576
      %28 = vsyncadd [#allocation6], %s27
      %s29 = sshll.u32 [#allocation5], 4
      %s30 = int_to_ptr.vmem [resolvable:$true] %s29
      %35 = dma.hbm_to_vmem [thread:$0]  %s1, 24576, %s30, [#allocation6], 256, 256, 16
    $region9: #{tpu_custom_call.1} parent=1 // pred_fallthru
      _
    // Predicated region
    $region10: #{tpu_custom_call.1} parent=1 // pred_check
      _
    $region11: #{tpu_custom_call.1} parent=1 // pred_check_branch
      %37 = sbr.rel (0) target = $region13
    $region12: #{tpu_custom_call.1} parent=1 // pred_region
      _
    $region13: #{tpu_custom_call.1} parent=1 // pred_fallthru
      _
    // Predicated region
    $region14: #{tpu_custom_call.1} parent=1 // pred_check
      _
    $region15: #{tpu_custom_call.1} parent=1 // pred_check_branch
      %39 = sbr.rel (0) target = $region17
    $region16: #{tpu_custom_call.1} parent=1 // pred_region
      %s41 = ssub.s32 8192, 8192
      %42 = vsyncadd [#allocation6], %s41
      %s43 = sshll.u32 [#allocation7], 4
      %s44 = int_to_ptr.vmem [resolvable:$true] %s43
      %49 = dma.hbm_to_vmem [thread:$0]  %s3, 8192, %s44, [#allocation6], 256, 256, 16
    $region17: #{tpu_custom_call.1} parent=1 // pred_fallthru
      _
    // Predicated region
    $region18: #{tpu_custom_call.1} parent=1 // pred_check
      _
    $region19: #{tpu_custom_call.1} parent=1 // pred_check_branch
      %51 = sbr.rel (0) target = $region21
    $region20: #{tpu_custom_call.1} parent=1 // pred_region
      _
    $region21: #{tpu_custom_call.1} parent=1 // pred_fallthru
      _
    // Predicated region
    $region22: #{tpu_custom_call.1} parent=1 // pred_check
      _
    $region23: #{tpu_custom_call.1} parent=1 // pred_check_branch
      %53 = sbr.rel (0) target = $region25
    $region24: #{tpu_custom_call.1} parent=1 // pred_region
      _
    $region25: #{tpu_custom_call.1} parent=1 // pred_fallthru
      _
    // Predicated region
    $region26: #{tpu_custom_call.1} parent=1 // pred_check
      _
    $region27: #{tpu_custom_call.1} parent=1 // pred_check_branch
      %55 = sbr.rel (0) target = $region29
    $region28: #{tpu_custom_call.1} parent=1 // pred_region
      %56 = dma.done [#allocation3], 768
    $region29: #{tpu_custom_call.1} parent=1 // pred_fallthru
      _
    // Predicated region
    $region30: #{tpu_custom_call.1} parent=1 // pred_check
      _
    $region31: #{tpu_custom_call.1} parent=1 // pred_check_branch
      %58 = sbr.rel (0) target = $region33
    $region32: #{tpu_custom_call.1} parent=1 // pred_region
      %59 = dma.done [#allocation6], 24576
    $region33: #{tpu_custom_call.1} parent=1 // pred_fallthru
      _
    // Predicated region
    $region34: #{tpu_custom_call.1} parent=1 // pred_check
      _
    $region35: #{tpu_custom_call.1} parent=1 // pred_check_branch
      %61 = sbr.rel (0) target = $region37
    $region36: #{tpu_custom_call.1} parent=1 // pred_region
      %62 = dma.done [#allocation6], 8192
    $region37: #{tpu_custom_call.1} parent=1 // pred_fallthru
      _
    %v63 = vld [vmem:[#allocation2] sm:$0xff]
    %v64 = vld [vmem:[#allocation2 + $0x8] sm:$0xff]
    %v65 = vld [vmem:[#allocation2 + $0x10] sm:$0xff]
    %v66 = vld [vmem:[#allocation2 + $0x18] sm:$0xff]
    %v67 = vld [vmem:[#allocation2 + $0x20] sm:$0xff]
    %v68 = vld [vmem:[#allocation2 + $0x28] sm:$0xff]
    %v69 = vld [vmem:[#allocation5] sm:$0xff]
    %v70 = vld [vmem:[#allocation5 + $0x8] sm:$0xff]
    %v71 = vld [vmem:[#allocation5 + $0x10] sm:$0xff]
    %v72 = vld [vmem:[#allocation5 + $0x18] sm:$0xff]
    %v73 = vld [vmem:[#allocation5 + $0x20] sm:$0xff]
    %v74 = vld [vmem:[#allocation5 + $0x28] sm:$0xff]
    %v75 = vld [vmem:[#allocation5 + $0x30] sm:$0xff]
    %v76 = vld [vmem:[#allocation5 + $0x38] sm:$0xff]
    %v77 = vld [vmem:[#allocation5 + $0x40] sm:$0xff]
    %v78 = vld [vmem:[#allocation5 + $0x48] sm:$0xff]
    %v79 = vld [vmem:[#allocation5 + $0x50] sm:$0xff]
    %v80 = vld [vmem:[#allocation5 + $0x58] sm:$0xff]
    %v81 = vld [vmem:[#allocation5 + $0x60] sm:$0xff]
    %v82 = vld [vmem:[#allocation5 + $0x68] sm:$0xff]
    %v83 = vld [vmem:[#allocation5 + $0x70] sm:$0xff]
    %v84 = vld [vmem:[#allocation5 + $0x78] sm:$0xff]
    %v85 = vld [vmem:[#allocation5 + $0x80] sm:$0xff]
    %v86 = vld [vmem:[#allocation5 + $0x88] sm:$0xff]
    %v87 = vld [vmem:[#allocation5 + $0x90] sm:$0xff]
    %v88 = vld [vmem:[#allocation5 + $0x98] sm:$0xff]
    %v89 = vld [vmem:[#allocation5 + $0xa0] sm:$0xff]
    %v90 = vld [vmem:[#allocation5 + $0xa8] sm:$0xff]
    %v91 = vld [vmem:[#allocation5 + $0xb0] sm:$0xff]
    %v92 = vld [vmem:[#allocation5 + $0xb8] sm:$0xff]
    %v93 = vld [vmem:[#allocation5 + $0xc0] sm:$0xff]
    %v94 = vld [vmem:[#allocation5 + $0xc8] sm:$0xff]
    %v95 = vld [vmem:[#allocation5 + $0xd0] sm:$0xff]
    %v96 = vld [vmem:[#allocation5 + $0xd8] sm:$0xff]
    %v97 = vld [vmem:[#allocation5 + $0xe0] sm:$0xff]
    %v98 = vld [vmem:[#allocation5 + $0xe8] sm:$0xff]
    %v99 = vld [vmem:[#allocation5 + $0xf0] sm:$0xff]
    %v100 = vld [vmem:[#allocation5 + $0xf8] sm:$0xff]
    %v101 = vld [vmem:[#allocation5 + $0x100] sm:$0xff]
    %v102 = vld [vmem:[#allocation5 + $0x108] sm:$0xff]
    %v103 = vld [vmem:[#allocation5 + $0x110] sm:$0xff]
    %v104 = vld [vmem:[#allocation5 + $0x118] sm:$0xff]
    %v105 = vld [vmem:[#allocation5 + $0x120] sm:$0xff]
    %v106 = vld [vmem:[#allocation5 + $0x128] sm:$0xff]
    %v107 = vld [vmem:[#allocation5 + $0x130] sm:$0xff]
    %v108 = vld [vmem:[#allocation5 + $0x138] sm:$0xff]
    %v109 = vld [vmem:[#allocation5 + $0x140] sm:$0xff]
    %v110 = vld [vmem:[#allocation5 + $0x148] sm:$0xff]
    %v111 = vld [vmem:[#allocation5 + $0x150] sm:$0xff]
    %v112 = vld [vmem:[#allocation5 + $0x158] sm:$0xff]
    %v113 = vld [vmem:[#allocation5 + $0x160] sm:$0xff]
    %v114 = vld [vmem:[#allocation5 + $0x168] sm:$0xff]
    %v115 = vld [vmem:[#allocation5 + $0x170] sm:$0xff]
    %v116 = vld [vmem:[#allocation5 + $0x178] sm:$0xff]
    %v117 = vld [vmem:[#allocation5 + $0x180] sm:$0xff]
    %v118 = vld [vmem:[#allocation5 + $0x188] sm:$0xff]
    %v119 = vld [vmem:[#allocation5 + $0x190] sm:$0xff]
    %v120 = vld [vmem:[#allocation5 + $0x198] sm:$0xff]
    %v121 = vld [vmem:[#allocation5 + $0x1a0] sm:$0xff]
    %v122 = vld [vmem:[#allocation5 + $0x1a8] sm:$0xff]
    %v123 = vld [vmem:[#allocation5 + $0x1b0] sm:$0xff]
    %v124 = vld [vmem:[#allocation5 + $0x1b8] sm:$0xff]
    %v125 = vld [vmem:[#allocation5 + $0x1c0] sm:$0xff]
    %v126 = vld [vmem:[#allocation5 + $0x1c8] sm:$0xff]
    %v127 = vld [vmem:[#allocation5 + $0x1d0] sm:$0xff]
    %v128 = vld [vmem:[#allocation5 + $0x1d8] sm:$0xff]
    %v129 = vld [vmem:[#allocation5 + $0x1e0] sm:$0xff]
    %v130 = vld [vmem:[#allocation5 + $0x1e8] sm:$0xff]
    %v131 = vld [vmem:[#allocation5 + $0x1f0] sm:$0xff]
    %v132 = vld [vmem:[#allocation5 + $0x1f8] sm:$0xff]
    %v133 = vld [vmem:[#allocation5 + $0x200] sm:$0xff]
    %v134 = vld [vmem:[#allocation5 + $0x208] sm:$0xff]
    %v135 = vld [vmem:[#allocation5 + $0x210] sm:$0xff]
    %v136 = vld [vmem:[#allocation5 + $0x218] sm:$0xff]
    %v137 = vld [vmem:[#allocation5 + $0x220] sm:$0xff]
    %v138 = vld [vmem:[#allocation5 + $0x228] sm:$0xff]
    %v139 = vld [vmem:[#allocation5 + $0x230] sm:$0xff]
    %v140 = vld [vmem:[#allocation5 + $0x238] sm:$0xff]
    %v141 = vld [vmem:[#allocation5 + $0x240] sm:$0xff]
    %v142 = vld [vmem:[#allocation5 + $0x248] sm:$0xff]
    %v143 = vld [vmem:[#allocation5 + $0x250] sm:$0xff]
    %v144 = vld [vmem:[#allocation5 + $0x258] sm:$0xff]
    %v145 = vld [vmem:[#allocation5 + $0x260] sm:$0xff]
    %v146 = vld [vmem:[#allocation5 + $0x268] sm:$0xff]
    %v147 = vld [vmem:[#allocation5 + $0x270] sm:$0xff]
    %v148 = vld [vmem:[#allocation5 + $0x278] sm:$0xff]
    %v149 = vld [vmem:[#allocation5 + $0x280] sm:$0xff]
    %v150 = vld [vmem:[#allocation5 + $0x288] sm:$0xff]
    %v151 = vld [vmem:[#allocation5 + $0x290] sm:$0xff]
    %v152 = vld [vmem:[#allocation5 + $0x298] sm:$0xff]
    %v153 = vld [vmem:[#allocation5 + $0x2a0] sm:$0xff]
    %v154 = vld [vmem:[#allocation5 + $0x2a8] sm:$0xff]
    %v155 = vld [vmem:[#allocation5 + $0x2b0] sm:$0xff]
    %v156 = vld [vmem:[#allocation5 + $0x2b8] sm:$0xff]
    %v157 = vld [vmem:[#allocation5 + $0x2c0] sm:$0xff]
    %v158 = vld [vmem:[#allocation5 + $0x2c8] sm:$0xff]
    %v159 = vld [vmem:[#allocation5 + $0x2d0] sm:$0xff]
    %v160 = vld [vmem:[#allocation5 + $0x2d8] sm:$0xff]
    %v161 = vld [vmem:[#allocation5 + $0x2e0] sm:$0xff]
    %v162 = vld [vmem:[#allocation5 + $0x2e8] sm:$0xff]
    %v163 = vld [vmem:[#allocation5 + $0x2f0] sm:$0xff]
    %v164 = vld [vmem:[#allocation5 + $0x2f8] sm:$0xff]
    %v165 = vld [vmem:[#allocation5 + $0x300] sm:$0xff]
    %v166 = vld [vmem:[#allocation5 + $0x308] sm:$0xff]
    %v167 = vld [vmem:[#allocation5 + $0x310] sm:$0xff]
    %v168 = vld [vmem:[#allocation5 + $0x318] sm:$0xff]
    %v169 = vld [vmem:[#allocation5 + $0x320] sm:$0xff]
    %v170 = vld [vmem:[#allocation5 + $0x328] sm:$0xff]
    %v171 = vld [vmem:[#allocation5 + $0x330] sm:$0xff]
    %v172 = vld [vmem:[#allocation5 + $0x338] sm:$0xff]
    %v173 = vld [vmem:[#allocation5 + $0x340] sm:$0xff]
    %v174 = vld [vmem:[#allocation5 + $0x348] sm:$0xff]
    %v175 = vld [vmem:[#allocation5 + $0x350] sm:$0xff]
    %v176 = vld [vmem:[#allocation5 + $0x358] sm:$0xff]
    %v177 = vld [vmem:[#allocation5 + $0x360] sm:$0xff]
    %v178 = vld [vmem:[#allocation5 + $0x368] sm:$0xff]
    %v179 = vld [vmem:[#allocation5 + $0x370] sm:$0xff]
    %v180 = vld [vmem:[#allocation5 + $0x378] sm:$0xff]
    %v181 = vld [vmem:[#allocation5 + $0x380] sm:$0xff]
    %v182 = vld [vmem:[#allocation5 + $0x388] sm:$0xff]
    %v183 = vld [vmem:[#allocation5 + $0x390] sm:$0xff]
    %v184 = vld [vmem:[#allocation5 + $0x398] sm:$0xff]
    %v185 = vld [vmem:[#allocation5 + $0x3a0] sm:$0xff]
    %v186 = vld [vmem:[#allocation5 + $0x3a8] sm:$0xff]
    %v187 = vld [vmem:[#allocation5 + $0x3b0] sm:$0xff]
    %v188 = vld [vmem:[#allocation5 + $0x3b8] sm:$0xff]
    %v189 = vld [vmem:[#allocation5 + $0x3c0] sm:$0xff]
    %v190 = vld [vmem:[#allocation5 + $0x3c8] sm:$0xff]
    %v191 = vld [vmem:[#allocation5 + $0x3d0] sm:$0xff]
    %v192 = vld [vmem:[#allocation5 + $0x3d8] sm:$0xff]
    %v193 = vld [vmem:[#allocation5 + $0x3e0] sm:$0xff]
    %v194 = vld [vmem:[#allocation5 + $0x3e8] sm:$0xff]
    %v195 = vld [vmem:[#allocation5 + $0x3f0] sm:$0xff]
    %v196 = vld [vmem:[#allocation5 + $0x3f8] sm:$0xff]
    %v197 = vld [vmem:[#allocation5 + $0x400] sm:$0xff]
    %v198 = vld [vmem:[#allocation5 + $0x408] sm:$0xff]
    %v199 = vld [vmem:[#allocation5 + $0x410] sm:$0xff]
    %v200 = vld [vmem:[#allocation5 + $0x418] sm:$0xff]
    %v201 = vld [vmem:[#allocation5 + $0x420] sm:$0xff]
    %v202 = vld [vmem:[#allocation5 + $0x428] sm:$0xff]
    %v203 = vld [vmem:[#allocation5 + $0x430] sm:$0xff]
    %v204 = vld [vmem:[#allocation5 + $0x438] sm:$0xff]
    %v205 = vld [vmem:[#allocation5 + $0x440] sm:$0xff]
    %v206 = vld [vmem:[#allocation5 + $0x448] sm:$0xff]
    %v207 = vld [vmem:[#allocation5 + $0x450] sm:$0xff]
    %v208 = vld [vmem:[#allocation5 + $0x458] sm:$0xff]
    %v209 = vld [vmem:[#allocation5 + $0x460] sm:$0xff]
    %v210 = vld [vmem:[#allocation5 + $0x468] sm:$0xff]
    %v211 = vld [vmem:[#allocation5 + $0x470] sm:$0xff]
    %v212 = vld [vmem:[#allocation5 + $0x478] sm:$0xff]
    %v213 = vld [vmem:[#allocation5 + $0x480] sm:$0xff]
    %v214 = vld [vmem:[#allocation5 + $0x488] sm:$0xff]
    %v215 = vld [vmem:[#allocation5 + $0x490] sm:$0xff]
    %v216 = vld [vmem:[#allocation5 + $0x498] sm:$0xff]
    %v217 = vld [vmem:[#allocation5 + $0x4a0] sm:$0xff]
    %v218 = vld [vmem:[#allocation5 + $0x4a8] sm:$0xff]
    %v219 = vld [vmem:[#allocation5 + $0x4b0] sm:$0xff]
    %v220 = vld [vmem:[#allocation5 + $0x4b8] sm:$0xff]
    %v221 = vld [vmem:[#allocation5 + $0x4c0] sm:$0xff]
    %v222 = vld [vmem:[#allocation5 + $0x4c8] sm:$0xff]
    %v223 = vld [vmem:[#allocation5 + $0x4d0] sm:$0xff]
    %v224 = vld [vmem:[#allocation5 + $0x4d8] sm:$0xff]
    %v225 = vld [vmem:[#allocation5 + $0x4e0] sm:$0xff]
    %v226 = vld [vmem:[#allocation5 + $0x4e8] sm:$0xff]
    %v227 = vld [vmem:[#allocation5 + $0x4f0] sm:$0xff]
    %v228 = vld [vmem:[#allocation5 + $0x4f8] sm:$0xff]
    %v229 = vld [vmem:[#allocation5 + $0x500] sm:$0xff]
    %v230 = vld [vmem:[#allocation5 + $0x508] sm:$0xff]
    %v231 = vld [vmem:[#allocation5 + $0x510] sm:$0xff]
    %v232 = vld [vmem:[#allocation5 + $0x518] sm:$0xff]
    %v233 = vld [vmem:[#allocation5 + $0x520] sm:$0xff]
    %v234 = vld [vmem:[#allocation5 + $0x528] sm:$0xff]
    %v235 = vld [vmem:[#allocation5 + $0x530] sm:$0xff]
    %v236 = vld [vmem:[#allocation5 + $0x538] sm:$0xff]
    %v237 = vld [vmem:[#allocation5 + $0x540] sm:$0xff]
    %v238 = vld [vmem:[#allocation5 + $0x548] sm:$0xff]
    %v239 = vld [vmem:[#allocation5 + $0x550] sm:$0xff]
    %v240 = vld [vmem:[#allocation5 + $0x558] sm:$0xff]
    %v241 = vld [vmem:[#allocation5 + $0x560] sm:$0xff]
    %v242 = vld [vmem:[#allocation5 + $0x568] sm:$0xff]
    %v243 = vld [vmem:[#allocation5 + $0x570] sm:$0xff]
    %v244 = vld [vmem:[#allocation5 + $0x578] sm:$0xff]
    %v245 = vld [vmem:[#allocation5 + $0x580] sm:$0xff]
    %v246 = vld [vmem:[#allocation5 + $0x588] sm:$0xff]
    %v247 = vld [vmem:[#allocation5 + $0x590] sm:$0xff]
    %v248 = vld [vmem:[#allocation5 + $0x598] sm:$0xff]
    %v249 = vld [vmem:[#allocation5 + $0x5a0] sm:$0xff]
    %v250 = vld [vmem:[#allocation5 + $0x5a8] sm:$0xff]
    %v251 = vld [vmem:[#allocation5 + $0x5b0] sm:$0xff]
    %v252 = vld [vmem:[#allocation5 + $0x5b8] sm:$0xff]
    %v253 = vld [vmem:[#allocation5 + $0x5c0] sm:$0xff]
    %v254 = vld [vmem:[#allocation5 + $0x5c8] sm:$0xff]
    %v255 = vld [vmem:[#allocation5 + $0x5d0] sm:$0xff]
    %v256 = vld [vmem:[#allocation5 + $0x5d8] sm:$0xff]
    %v257 = vld [vmem:[#allocation5 + $0x5e0] sm:$0xff]
    %v258 = vld [vmem:[#allocation5 + $0x5e8] sm:$0xff]
    %v259 = vld [vmem:[#allocation5 + $0x5f0] sm:$0xff]
    %v260 = vld [vmem:[#allocation5 + $0x5f8] sm:$0xff]
    %v261 = vld [vmem:[%s2] sm:$0x3]
    %v263 = vlaneseq
    %v264 = vshrl.u32 %v263, 7
    %v265 = vsub.s32 0, %v264
    %v266 = vrot.slane %v261, %v265
    %v267 = vlaneseq
    %v268 = vshrl.u32 %v267, 7
    %v269 = vsub.s32 1, %v268
    %v270 = vrot.slane %v261, %v269
    %273 = vmatprep.subr.mxu0 %v70
    %274 = vmatpush1.msra.mxu0 %v69
    %275 = vmatprep.subr.mxu0 %v72
    %276 = vmatpush1.msra.mxu0 %v71
    %277 = vmatprep.subr.mxu0 %v74
    %278 = vmatpush1.msra.mxu0 %v73
    %279 = vmatprep.subr.mxu0 %v76
    %280 = vmatpush1.msra.mxu0 %v75
    %281 = vmatprep.subr.mxu0 %v78
    %282 = vmatpush1.msra.mxu0 %v77
    %283 = vmatprep.subr.mxu0 %v80
    %284 = vmatpush1.msra.mxu0 %v79
    %285 = vmatprep.subr.mxu0 %v82
    %286 = vmatpush1.msra.mxu0 %v81
    %287 = vmatprep.subr.mxu0 %v84
    %288 = vmatpush1.msra.mxu0 %v83
    %289 = vmatprep.subr.mxu0 %v86
    %290 = vmatpush1.msra.mxu0 %v85
    %291 = vmatprep.subr.mxu0 %v88
    %292 = vmatpush1.msra.mxu0 %v87
    %293 = vmatprep.subr.mxu0 %v90
    %294 = vmatpush1.msra.mxu0 %v89
    %295 = vmatprep.subr.mxu0 %v92
    %296 = vmatpush1.msra.mxu0 %v91
    %297 = vmatprep.subr.mxu0 %v94
    %298 = vmatpush1.msra.mxu0 %v93
    %299 = vmatprep.subr.mxu0 %v96
    %300 = vmatpush1.msra.mxu0 %v95
    %301 = vmatprep.subr.mxu0 %v98
    %302 = vmatpush1.msra.mxu0 %v97
    %303 = vmatprep.subr.mxu0 %v100
    %304 = vmatpush1.msra.mxu0 %v99
    %305 = vmatprep.subr.mxu0 %v102
    %306 = vmatpush1.msra.mxu0 %v101
    %307 = vmatprep.subr.mxu0 %v104
    %308 = vmatpush1.msra.mxu0 %v103
    %309 = vmatprep.subr.mxu0 %v106
    %310 = vmatpush1.msra.mxu0 %v105
    %311 = vmatprep.subr.mxu0 %v108
    %312 = vmatpush1.msra.mxu0 %v107
    %313 = vmatprep.subr.mxu0 %v110
    %314 = vmatpush1.msra.mxu0 %v109
    %315 = vmatprep.subr.mxu0 %v112
    %316 = vmatpush1.msra.mxu0 %v111
    %317 = vmatprep.subr.mxu0 %v114
    %318 = vmatpush1.msra.mxu0 %v113
    %319 = vmatprep.subr.mxu0 %v116
    %320 = vmatpush1.msra.mxu0 %v115
    %321 = vmatprep.subr.mxu0 %v118
    %322 = vmatpush1.msra.mxu0 %v117
    %323 = vmatprep.subr.mxu0 %v120
    %324 = vmatpush1.msra.mxu0 %v119
    %325 = vmatprep.subr.mxu0 %v122
    %326 = vmatpush1.msra.mxu0 %v121
    %327 = vmatprep.subr.mxu0 %v124
    %328 = vmatpush1.msra.mxu0 %v123
    %329 = vmatprep.subr.mxu0 %v126
    %330 = vmatpush1.msra.mxu0 %v125
    %331 = vmatprep.subr.mxu0 %v128
    %332 = vmatpush1.msra.mxu0 %v127
    %333 = vmatprep.subr.mxu0 %v130
    %334 = vmatpush1.msra.mxu0 %v129
    %335 = vmatprep.subr.mxu0 %v132
    %336 = vmatpush1.msra.mxu0 %v131
    %337 = vmatprep.mubr.f32.mxu0 %v64
    %338 = vmatmul.mubr.f32.gmra.mrb[0].mxu0 %v63
    %v339 = vpop.f32.mrb[0].mxu0
    %v340 = vadd.f32 %v266, %v339
    %v341 = vpop.f32.mrb[0].mxu0
    %v342 = vadd.f32 %v270, %v341
    %343 = vdwg.mxu0
    %344 = vmatprep.subr.mxu0 %v134
    %345 = vmatpush1.msra.mxu0 %v133
    %346 = vmatprep.subr.mxu0 %v136
    %347 = vmatpush1.msra.mxu0 %v135
    %348 = vmatprep.subr.mxu0 %v138
    %349 = vmatpush1.msra.mxu0 %v137
    %350 = vmatprep.subr.mxu0 %v140
    %351 = vmatpush1.msra.mxu0 %v139
    %352 = vmatprep.subr.mxu0 %v142
    %353 = vmatpush1.msra.mxu0 %v141
    %354 = vmatprep.subr.mxu0 %v144
    %355 = vmatpush1.msra.mxu0 %v143
    %356 = vmatprep.subr.mxu0 %v146
    %357 = vmatpush1.msra.mxu0 %v145
    %358 = vmatprep.subr.mxu0 %v148
    %359 = vmatpush1.msra.mxu0 %v147
    %360 = vmatprep.subr.mxu0 %v150
    %361 = vmatpush1.msra.mxu0 %v149
    %362 = vmatprep.subr.mxu0 %v152
    %363 = vmatpush1.msra.mxu0 %v151
    %364 = vmatprep.subr.mxu0 %v154
    %365 = vmatpush1.msra.mxu0 %v153
    %366 = vmatprep.subr.mxu0 %v156
    %367 = vmatpush1.msra.mxu0 %v155
    %368 = vmatprep.subr.mxu0 %v158
    %369 = vmatpush1.msra.mxu0 %v157
    %370 = vmatprep.subr.mxu0 %v160
    %371 = vmatpush1.msra.mxu0 %v159
    %372 = vmatprep.subr.mxu0 %v162
    %373 = vmatpush1.msra.mxu0 %v161
    %374 = vmatprep.subr.mxu0 %v164
    %375 = vmatpush1.msra.mxu0 %v163
    %376 = vmatprep.subr.mxu0 %v166
    %377 = vmatpush1.msra.mxu0 %v165
    %378 = vmatprep.subr.mxu0 %v168
    %379 = vmatpush1.msra.mxu0 %v167
    %380 = vmatprep.subr.mxu0 %v170
    %381 = vmatpush1.msra.mxu0 %v169
    %382 = vmatprep.subr.mxu0 %v172
    %383 = vmatpush1.msra.mxu0 %v171
    %384 = vmatprep.subr.mxu0 %v174
    %385 = vmatpush1.msra.mxu0 %v173
    %386 = vmatprep.subr.mxu0 %v176
    %387 = vmatpush1.msra.mxu0 %v175
    %388 = vmatprep.subr.mxu0 %v178
    %389 = vmatpush1.msra.mxu0 %v177
    %390 = vmatprep.subr.mxu0 %v180
    %391 = vmatpush1.msra.mxu0 %v179
    %392 = vmatprep.subr.mxu0 %v182
    %393 = vmatpush1.msra.mxu0 %v181
    %394 = vmatprep.subr.mxu0 %v184
    %395 = vmatpush1.msra.mxu0 %v183
    %396 = vmatprep.subr.mxu0 %v186
    %397 = vmatpush1.msra.mxu0 %v185
    %398 = vmatprep.subr.mxu0 %v188
    %399 = vmatpush1.msra.mxu0 %v187
    %400 = vmatprep.subr.mxu0 %v190
    %401 = vmatpush1.msra.mxu0 %v189
    %402 = vmatprep.subr.mxu0 %v192
    %403 = vmatpush1.msra.mxu0 %v191
    %404 = vmatprep.subr.mxu0 %v194
    %405 = vmatpush1.msra.mxu0 %v193
    %406 = vmatprep.subr.mxu0 %v196
    %407 = vmatpush1.msra.mxu0 %v195
    %408 = vmatprep.mubr.f32.mxu0 %v66
    %409 = vmatmul.mubr.f32.gmra.mrb[0].mxu0 %v65
    %v410 = vpop.f32.mrb[0].mxu0
    %v411 = vadd.f32 %v340, %v410
    %v412 = vpop.f32.mrb[0].mxu0
    %v413 = vadd.f32 %v342, %v412
    %414 = vdwg.mxu0
    %415 = vmatprep.subr.mxu0 %v198
    %416 = vmatpush1.msra.mxu0 %v197
    %417 = vmatprep.subr.mxu0 %v200
    %418 = vmatpush1.msra.mxu0 %v199
    %419 = vmatprep.subr.mxu0 %v202
    %420 = vmatpush1.msra.mxu0 %v201
    %421 = vmatprep.subr.mxu0 %v204
    %422 = vmatpush1.msra.mxu0 %v203
    %423 = vmatprep.subr.mxu0 %v206
    %424 = vmatpush1.msra.mxu0 %v205
    %425 = vmatprep.subr.mxu0 %v208
    %426 = vmatpush1.msra.mxu0 %v207
    %427 = vmatprep.subr.mxu0 %v210
    %428 = vmatpush1.msra.mxu0 %v209
    %429 = vmatprep.subr.mxu0 %v212
    %430 = vmatpush1.msra.mxu0 %v211
    %431 = vmatprep.subr.mxu0 %v214
    %432 = vmatpush1.msra.mxu0 %v213
    %433 = vmatprep.subr.mxu0 %v216
    %434 = vmatpush1.msra.mxu0 %v215
    %435 = vmatprep.subr.mxu0 %v218
    %436 = vmatpush1.msra.mxu0 %v217
    %437 = vmatprep.subr.mxu0 %v220
    %438 = vmatpush1.msra.mxu0 %v219
    %439 = vmatprep.subr.mxu0 %v222
    %440 = vmatpush1.msra.mxu0 %v221
    %441 = vmatprep.subr.mxu0 %v224
    %442 = vmatpush1.msra.mxu0 %v223
    %443 = vmatprep.subr.mxu0 %v226
    %444 = vmatpush1.msra.mxu0 %v225
    %445 = vmatprep.subr.mxu0 %v228
    %446 = vmatpush1.msra.mxu0 %v227
    %447 = vmatprep.subr.mxu0 %v230
    %448 = vmatpush1.msra.mxu0 %v229
    %449 = vmatprep.subr.mxu0 %v232
    %450 = vmatpush1.msra.mxu0 %v231
    %451 = vmatprep.subr.mxu0 %v234
    %452 = vmatpush1.msra.mxu0 %v233
    %453 = vmatprep.subr.mxu0 %v236
    %454 = vmatpush1.msra.mxu0 %v235
    %455 = vmatprep.subr.mxu0 %v238
    %456 = vmatpush1.msra.mxu0 %v237
    %457 = vmatprep.subr.mxu0 %v240
    %458 = vmatpush1.msra.mxu0 %v239
    %459 = vmatprep.subr.mxu0 %v242
    %460 = vmatpush1.msra.mxu0 %v241
    %461 = vmatprep.subr.mxu0 %v244
    %462 = vmatpush1.msra.mxu0 %v243
    %463 = vmatprep.subr.mxu0 %v246
    %464 = vmatpush1.msra.mxu0 %v245
    %465 = vmatprep.subr.mxu0 %v248
    %466 = vmatpush1.msra.mxu0 %v247
    %467 = vmatprep.subr.mxu0 %v250
    %468 = vmatpush1.msra.mxu0 %v249
    %469 = vmatprep.subr.mxu0 %v252
    %470 = vmatpush1.msra.mxu0 %v251
    %471 = vmatprep.subr.mxu0 %v254
    %472 = vmatpush1.msra.mxu0 %v253
    %473 = vmatprep.subr.mxu0 %v256
    %474 = vmatpush1.msra.mxu0 %v255
    %475 = vmatprep.subr.mxu0 %v258
    %476 = vmatpush1.msra.mxu0 %v257
    %477 = vmatprep.subr.mxu0 %v260
    %478 = vmatpush1.msra.mxu0 %v259
    %479 = vmatprep.mubr.f32.mxu0 %v68
    %480 = vmatmul.mubr.f32.gmra.mrb[0].mxu0 %v67
    %v481 = vpop.f32.mrb[0].mxu0
    %v482 = vadd.f32 %v411, %v481
    %v483 = vpop.f32.mrb[0].mxu0
    %v484 = vadd.f32 %v413, %v483
    %485 = vdwg.mxu0
    %v486 = vld [vmem:[#allocation7] sm:$0xff]
    %v487 = vld [vmem:[#allocation7 + $0x8] sm:$0xff]
    %v488 = vld [vmem:[#allocation7 + $0x10] sm:$0xff]
    %v489 = vld [vmem:[#allocation7 + $0x18] sm:$0xff]
    %v490 = vld [vmem:[#allocation7 + $0x20] sm:$0xff]
    %v491 = vld [vmem:[#allocation7 + $0x28] sm:$0xff]
    %v492 = vld [vmem:[#allocation7 + $0x30] sm:$0xff]
    %v493 = vld [vmem:[#allocation7 + $0x38] sm:$0xff]
    %v494 = vld [vmem:[#allocation7 + $0x40] sm:$0xff]
    %v495 = vld [vmem:[#allocation7 + $0x48] sm:$0xff]
    %v496 = vld [vmem:[#allocation7 + $0x50] sm:$0xff]
    %v497 = vld [vmem:[#allocation7 + $0x58] sm:$0xff]
    %v498 = vld [vmem:[#allocation7 + $0x60] sm:$0xff]
    %v499 = vld [vmem:[#allocation7 + $0x68] sm:$0xff]
    %v500 = vld [vmem:[#allocation7 + $0x70] sm:$0xff]
    %v501 = vld [vmem:[#allocation7 + $0x78] sm:$0xff]
    %v502 = vld [vmem:[#allocation7 + $0x80] sm:$0xff]
    %v503 = vld [vmem:[#allocation7 + $0x88] sm:$0xff]
    %v504 = vld [vmem:[#allocation7 + $0x90] sm:$0xff]
    %v505 = vld [vmem:[#allocation7 + $0x98] sm:$0xff]
    %v506 = vld [vmem:[#allocation7 + $0xa0] sm:$0xff]
    %v507 = vld [vmem:[#allocation7 + $0xa8] sm:$0xff]
    %v508 = vld [vmem:[#allocation7 + $0xb0] sm:$0xff]
    %v509 = vld [vmem:[#allocation7 + $0xb8] sm:$0xff]
    %v510 = vld [vmem:[#allocation7 + $0xc0] sm:$0xff]
    %v511 = vld [vmem:[#allocation7 + $0xc8] sm:$0xff]
    %v512 = vld [vmem:[#allocation7 + $0xd0] sm:$0xff]
    %v513 = vld [vmem:[#allocation7 + $0xd8] sm:$0xff]
    %v514 = vld [vmem:[#allocation7 + $0xe0] sm:$0xff]
    %v515 = vld [vmem:[#allocation7 + $0xe8] sm:$0xff]
    %v516 = vld [vmem:[#allocation7 + $0xf0] sm:$0xff]
    %v517 = vld [vmem:[#allocation7 + $0xf8] sm:$0xff]
    %v518 = vld [vmem:[#allocation7 + $0x100] sm:$0xff]
    %v519 = vld [vmem:[#allocation7 + $0x108] sm:$0xff]
    %v520 = vld [vmem:[#allocation7 + $0x110] sm:$0xff]
    %v521 = vld [vmem:[#allocation7 + $0x118] sm:$0xff]
    %v522 = vld [vmem:[#allocation7 + $0x120] sm:$0xff]
    %v523 = vld [vmem:[#allocation7 + $0x128] sm:$0xff]
    %v524 = vld [vmem:[#allocation7 + $0x130] sm:$0xff]
    %v525 = vld [vmem:[#allocation7 + $0x138] sm:$0xff]
    %v526 = vld [vmem:[#allocation7 + $0x140] sm:$0xff]
    %v527 = vld [vmem:[#allocation7 + $0x148] sm:$0xff]
    %v528 = vld [vmem:[#allocation7 + $0x150] sm:$0xff]
    %v529 = vld [vmem:[#allocation7 + $0x158] sm:$0xff]
    %v530 = vld [vmem:[#allocation7 + $0x160] sm:$0xff]
    %v531 = vld [vmem:[#allocation7 + $0x168] sm:$0xff]
    %v532 = vld [vmem:[#allocation7 + $0x170] sm:$0xff]
    %v533 = vld [vmem:[#allocation7 + $0x178] sm:$0xff]
    %v534 = vld [vmem:[#allocation7 + $0x180] sm:$0xff]
    %v535 = vld [vmem:[#allocation7 + $0x188] sm:$0xff]
    %v536 = vld [vmem:[#allocation7 + $0x190] sm:$0xff]
    %v537 = vld [vmem:[#allocation7 + $0x198] sm:$0xff]
    %v538 = vld [vmem:[#allocation7 + $0x1a0] sm:$0xff]
    %v539 = vld [vmem:[#allocation7 + $0x1a8] sm:$0xff]
    %v540 = vld [vmem:[#allocation7 + $0x1b0] sm:$0xff]
    %v541 = vld [vmem:[#allocation7 + $0x1b8] sm:$0xff]
    %v542 = vld [vmem:[#allocation7 + $0x1c0] sm:$0xff]
    %v543 = vld [vmem:[#allocation7 + $0x1c8] sm:$0xff]
    %v544 = vld [vmem:[#allocation7 + $0x1d0] sm:$0xff]
    %v545 = vld [vmem:[#allocation7 + $0x1d8] sm:$0xff]
    %v546 = vld [vmem:[#allocation7 + $0x1e0] sm:$0xff]
    %v547 = vld [vmem:[#allocation7 + $0x1e8] sm:$0xff]
    %v548 = vld [vmem:[#allocation7 + $0x1f0] sm:$0xff]
    %v549 = vld [vmem:[#allocation7 + $0x1f8] sm:$0xff]
    %v550 = vld [vmem:[%s4] sm:$0x3]
    %v552 = vlaneseq
    %v553 = vshrl.u32 %v552, 7
    %v554 = vsub.s32 0, %v553
    %v555 = vrot.slane %v550, %v554
    %v556 = vlaneseq
    %v557 = vshrl.u32 %v556, 7
    %v558 = vsub.s32 1, %v557
    %v559 = vrot.slane %v550, %v558
    %562 = vmatprep.subr.mxu0 %v487
    %563 = vmatpush1.msra.mxu0 %v486
    %564 = vmatprep.subr.mxu0 %v489
    %565 = vmatpush1.msra.mxu0 %v488
    %566 = vmatprep.subr.mxu0 %v491
    %567 = vmatpush1.msra.mxu0 %v490
    %568 = vmatprep.subr.mxu0 %v493
    %569 = vmatpush1.msra.mxu0 %v492
    %570 = vmatprep.subr.mxu0 %v495
    %571 = vmatpush1.msra.mxu0 %v494
    %572 = vmatprep.subr.mxu0 %v497
    %573 = vmatpush1.msra.mxu0 %v496
    %574 = vmatprep.subr.mxu0 %v499
    %575 = vmatpush1.msra.mxu0 %v498
    %576 = vmatprep.subr.mxu0 %v501
    %577 = vmatpush1.msra.mxu0 %v500
    %578 = vmatprep.subr.mxu0 %v503
    %579 = vmatpush1.msra.mxu0 %v502
    %580 = vmatprep.subr.mxu0 %v505
    %581 = vmatpush1.msra.mxu0 %v504
    %582 = vmatprep.subr.mxu0 %v507
    %583 = vmatpush1.msra.mxu0 %v506
    %584 = vmatprep.subr.mxu0 %v509
    %585 = vmatpush1.msra.mxu0 %v508
    %586 = vmatprep.subr.mxu0 %v511
    %587 = vmatpush1.msra.mxu0 %v510
    %588 = vmatprep.subr.mxu0 %v513
    %589 = vmatpush1.msra.mxu0 %v512
    %590 = vmatprep.subr.mxu0 %v515
    %591 = vmatpush1.msra.mxu0 %v514
    %592 = vmatprep.subr.mxu0 %v517
    %593 = vmatpush1.msra.mxu0 %v516
    %594 = vmatprep.subr.mxu0 %v519
    %595 = vmatpush1.msra.mxu0 %v518
    %596 = vmatprep.subr.mxu0 %v521
    %597 = vmatpush1.msra.mxu0 %v520
    %598 = vmatprep.subr.mxu0 %v523
    %599 = vmatpush1.msra.mxu0 %v522
    %600 = vmatprep.subr.mxu0 %v525
    %601 = vmatpush1.msra.mxu0 %v524
    %602 = vmatprep.subr.mxu0 %v527
    %603 = vmatpush1.msra.mxu0 %v526
    %604 = vmatprep.subr.mxu0 %v529
    %605 = vmatpush1.msra.mxu0 %v528
    %606 = vmatprep.subr.mxu0 %v531
    %607 = vmatpush1.msra.mxu0 %v530
    %608 = vmatprep.subr.mxu0 %v533
    %609 = vmatpush1.msra.mxu0 %v532
    %610 = vmatprep.subr.mxu0 %v535
    %611 = vmatpush1.msra.mxu0 %v534
    %612 = vmatprep.subr.mxu0 %v537
    %613 = vmatpush1.msra.mxu0 %v536
    %614 = vmatprep.subr.mxu0 %v539
    %615 = vmatpush1.msra.mxu0 %v538
    %616 = vmatprep.subr.mxu0 %v541
    %617 = vmatpush1.msra.mxu0 %v540
    %618 = vmatprep.subr.mxu0 %v543
    %619 = vmatpush1.msra.mxu0 %v542
    %620 = vmatprep.subr.mxu0 %v545
    %621 = vmatpush1.msra.mxu0 %v544
    %622 = vmatprep.subr.mxu0 %v547
    %623 = vmatpush1.msra.mxu0 %v546
    %624 = vmatprep.subr.mxu0 %v549
    %625 = vmatpush1.msra.mxu0 %v548
    %626 = vmatprep.mubr.f32.mxu0 %v484
    %627 = vmatmul.mubr.f32.gmra.mrb[0].mxu0 %v482
    %v628 = vpop.f32.mrb[0].mxu0
    %v629 = vadd.f32 %v555, %v628
    %v630 = vpop.f32.mrb[0].mxu0
    %v631 = vadd.f32 %v559, %v630
    %632 = vdwg.mxu0
    %v633 = vtanh.pop %v629
    %v634 = vtanh.pop %v631
    %v635 = vld [vmem:[%s5] sm:$0x3]
    %v637 = vlaneseq
    %v638 = vshrl.u32 %v637, 7
    %v639 = vsub.s32 0, %v638
    %v640 = vrot.slane %v635, %v639
    %v641 = vlaneseq
    %v642 = vshrl.u32 %v641, 7
    %v643 = vsub.s32 1, %v642
    %v644 = vrot.slane %v635, %v643
    %v647 = vmul.f32 %v633, %v640
    %v648 = vmul.f32 %v634, %v644
    %649 = vadd.xlane.f32.xlu0 %v647
    %v650 = vpop.xlane.xlu0 %649
    %651 = vadd.xlane.f32.xlu0 %v648
    %v652 = vpop.xlane.xlu0 %651
    %v653 = vsub.f32 %v650, %v652
    %v654 = vmul.f32 %v653, 0.5
    %v655 = vtanh.pop %v654
    %v656 = vadd.f32 %v655, 1.0
    %v657 = vmul.f32 %v656, 0.5
    %v658 = vsub.f32 1.0, %v657
    %v659 = vmul.f32 %v482, %v657
    %v660 = vmul.f32 %v484, %v658
    %v661 = vadd.f32 %v659, %v660
    %662 = vst [vmem:[#allocation8] sm:$0xff] %v661
    // Predicated region
    $region38: #{tpu_custom_call.1} parent=1 // pred_check
      _
    $region39: #{tpu_custom_call.1} parent=1 // pred_check_branch
      %664 = sbr.rel (0) target = $region41
    $region40: #{tpu_custom_call.1} parent=1 // pred_region
      %s666 = ssub.s32 128, 128
      %667 = vsyncadd [#allocation4], %s666
      %s669 = sshll.u32 [#allocation8], 4
      %s670 = int_to_ptr.vmem [resolvable:$true] %s669
      %672 = dma.vmem_to_hbm [thread:$0]  %s670, 128, %s6, [#allocation4]
    $region41: #{tpu_custom_call.1} parent=1 // pred_fallthru
      _
    // Predicated region
    $region42: #{tpu_custom_call.1} parent=1 // pred_check
      _
    $region43: #{tpu_custom_call.1} parent=1 // pred_check_branch
      %674 = sbr.rel (0) target = $region45
    $region44: #{tpu_custom_call.1} parent=1 // pred_region
      %675 = dma.done [#allocation4], 128
    $region45: #{tpu_custom_call.1} parent=1 // pred_fallthru
      _
    %676 = vsyncpa [#allocation3], 1
    %677 = vsyncpa [#allocation6], 1
    %678 = vsyncpa [#allocation4], 1

</llo_original>
